<compile_context>
chip_gen: v5e
topology: v5e:2x2
jax: 0.10.0
libtpu: 0.0.40
codegen_flags: <defaults>
</compile_context>

<pallas_src>
import functools

import jax
import jax.numpy as jnp
import numpy as np
from jax.experimental import pallas as pl
from jax.experimental.pallas import tpu as pltpu


def _round_up(x, m):
    return ((x + m - 1) // m) * m


def _focal_loss_kernel(logits_ref, targets_ref, alpha_ref, out_ref, acc_ref, *,
                       gamma, n_valid, num_tiles, tiles_per_split,
                       apply_alpha, mask_cols):
    p = pl.program_id(0)          # TensorCore split ("parallel")
    j = pl.program_id(1)          # batch-tile index within the split ("arbitrary")

    @pl.when(j == 0)
    def _init():
        acc_ref[...] = jnp.zeros_like(acc_ref)

    x = logits_ref[...].astype(jnp.float32)            # (C, tile_n)
    t = targets_ref[...]                               # (1, tile_n) int32
    c, tile_n = x.shape

    # one-hot of the target class (classes on sublanes)
    cls = jax.lax.broadcasted_iota(jnp.int32, (c, tile_n), 0)
    onehot = (cls == t).astype(jnp.float32)            # (C, tile_n)

    # softmax pieces — a single exp(x - m) feeds both probs and the log-prob
    m = jnp.max(x, axis=0, keepdims=True)              # (1, tile_n)
    e = jnp.exp(x - m)                                 # (C, tile_n)  EUP
    denom = jnp.sum(e, axis=0, keepdims=True)          # (1, tile_n)
    x_t = jnp.sum(x * onehot, axis=0, keepdims=True)   # logit of the target class
    e_t = jnp.sum(e * onehot, axis=0, keepdims=True)

    log_p = (x_t - m) - jnp.log(denom)                 # log softmax[target]
    probs = e_t / denom                                # softmax[target] (no 2nd exp)

    one_minus = 1.0 - probs
    g = float(gamma)
    if g == round(g) and g >= 0.0:
        gi = int(round(g))
        if gi == 0:
            focal = jnp.ones_like(one_minus)
        else:
            focal = one_minus
            for _ in range(gi - 1):                    # VALU multiply chain
                focal = focal * one_minus
    else:
        # general real gamma; (1-p)->0 underflows to 0, matching pow(0, g) = 0
        focal = jnp.exp(jnp.float32(g) *
                        jnp.log(jnp.maximum(one_minus, jnp.float32(1e-38))))

    per_sample = -(focal * log_p)                      # (1, tile_n)
    if apply_alpha:
        a = alpha_ref[...].astype(jnp.float32)         # (C, 1)
        alpha_t = jnp.sum(a * onehot, axis=0, keepdims=True)
        per_sample = per_sample * alpha_t

    if mask_cols:
        b = p * tiles_per_split + j                    # unclamped global block index
        last_real = num_tiles - 1

        @pl.when(b >= last_real)                       # partial / duplicate blocks
        def _tail():
            # keep the select form: garbage columns may hold NaN/Inf
            col = b * tile_n + jax.lax.broadcasted_iota(jnp.int32, (1, tile_n), 1)
            acc_ref[...] += jnp.where(col < n_valid, per_sample, 0.0)

        @pl.when(b < last_real)                        # fully-valid blocks: no mask
        def _body():
            acc_ref[...] += per_sample
    else:
        acc_ref[...] += per_sample

    @pl.when(j == pl.num_programs(1) - 1)
    def _finalize():
        out_ref[...] = jnp.reshape(
            jnp.sum(acc_ref[...], axis=1, keepdims=True), (1, 1, 1))


def focal_loss(logits, targets, alpha=None, gamma=2.0, size_average=True,
               logits_are_transposed=False, tile_n=None,
               vmem_budget_bytes=24 * 1024 * 1024):
    """logits: (N, C) (or (C, N) if logits_are_transposed); targets: (N,) ints."""
    if logits_are_transposed:
        logits_cn = logits
        c, n = logits.shape
    else:
        # TODO(synk): if the producing matmul can emit (C, N) directly, pass
        # logits_are_transposed=True and save this extra HBM read+write.
        n, c = logits.shape
        logits_cn = jnp.transpose(logits)

    apply_alpha = alpha is not None
    alpha_cn = (jnp.ones((c, 1), jnp.float32) if alpha is None
                else jnp.asarray(alpha, jnp.float32).reshape(c, 1))
    targets_row = jnp.asarray(targets, jnp.int32).reshape(1, n)

    # --- tile size from a VMEM byte budget (double-buffered inputs + accumulator)
    ldt = jnp.dtype(logits_cn.dtype)
    sub_pack = max(1, 32 // ldt.itemsize)                   # 8 (f32) / 16 (bf16)
    logit_bytes = _round_up(c, sub_pack) * ldt.itemsize     # per-sample VMEM
    tgt_bytes = 8 * 4                                       # (1, tn) i32, padded
    acc_bytes = 8 * 4                                       # (1, tn) f32 accumulator
    per_sample_bytes = 2 * (logit_bytes + tgt_bytes) + acc_bytes
    max_tile = max(128, (int(vmem_budget_bytes) // per_sample_bytes) // 128 * 128)
    tn = max_tile if tile_n is None else max(128, _round_up(int(tile_n), 128))

    if n <= tn:
        tn = n                            # single exact block — no padding, no mask
        num_tiles = 1
    else:
        num_tiles = int(pl.cdiv(n, tn))

    n_split = 2 if num_tiles >= 2 else 1  # use both TensorCores on v7x
    tiles_per_split = int(pl.cdiv(num_tiles, n_split))
    mask_cols = (n_split * tiles_per_split * tn) != n

    kernel = functools.partial(
        _focal_loss_kernel, gamma=float(gamma), n_valid=int(n),
        num_tiles=num_tiles, tiles_per_split=tiles_per_split,
        apply_alpha=bool(apply_alpha), mask_cols=bool(mask_cols))

    last_block = num_tiles - 1

    def data_map(p, j):
        # Clamp duplicate blocks (odd num_tiles under the 2-way split) onto the
        # last real block; their contribution is zeroed by the column mask.
        return (0, jnp.minimum(p * tiles_per_split + j, last_block))

    out = pl.pallas_call(
        kernel,
        out_shape=jax.ShapeDtypeStruct((n_split, 1, 1), jnp.float32),
        grid_spec=pltpu.PrefetchScalarGridSpec(
            num_scalar_prefetch=0,
            grid=(n_split, tiles_per_split),
            in_specs=[
                pl.BlockSpec((c, tn), data_map),             # logits tile
                pl.BlockSpec((1, tn), data_map),             # targets tile
                pl.BlockSpec((c, 1), lambda p, j: (0, 0)),   # alpha (resident)
            ],
            out_specs=pl.BlockSpec((1, 1, 1), lambda p, j: (p, 0, 0)),
            scratch_shapes=[pltpu.VMEM((1, tn), jnp.float32)],
        ),
        compiler_params=pltpu.CompilerParams(
            dimension_semantics=("parallel", "arbitrary"),
            vmem_limit_bytes=64 * 1024 * 1024,
        ),
    )(logits_cn, targets_row, alpha_cn)

    total = jnp.sum(out[:, 0, 0])
    if size_average:
        total = total / jnp.float32(n)
    return total


def _reference_focal_loss(logits, targets, alpha=None, gamma=2.0,
                          size_average=True):
    n, c = logits.shape
    p = jax.nn.softmax(logits.astype(jnp.float32), axis=1)
    onehot = jax.nn.one_hot(targets, c, dtype=jnp.float32)
    probs = jnp.sum(p * onehot, axis=1)
    a = (jnp.ones((c,), jnp.float32) if alpha is None
         else jnp.asarray(alpha, jnp.float32).reshape(-1))
    bl = -a[targets] * (1.0 - probs) ** gamma * jnp.log(probs)
    return jnp.mean(bl) if size_average else jnp.sum(bl)


if __name__ == "__main__":
    key = jax.random.PRNGKey(0)
    k1, k2, k3, k4 = jax.random.split(key, 4)

    # class_num = 7 as in the module default; small batch
    N, C = 8, 7
    logits = jax.random.normal(k1, (N, C), dtype=jnp.float32)
    targets = jax.random.randint(k2, (N,), 0, C, dtype=jnp.int32)
    loss = jax.block_until_ready(focal_loss(logits, targets, gamma=2.0,
                                            size_average=True))
    ref = jax.block_until_ready(_reference_focal_loss(logits, targets))
    assert np.allclose(np.asarray(loss), np.asarray(ref),
                       rtol=1e-5, atol=1e-6), (loss, ref)

    # multi-tile path: exercises the 2-way core split, ragged-block masking,
    # duplicate-block clamping, bf16 logits, per-class alpha and sum reduction.
    N2 = 300
    logits2 = jax.random.normal(k3, (N2, C), dtype=jnp.float32).astype(jnp.bfloat16)
    targets2 = jax.random.randint(k4, (N2,), 0, C, dtype=jnp.int32)
    alpha2 = jnp.array([0.25, 0.5, 0.75, 1.0, 1.25, 1.5, 1.75], jnp.float32)
    loss2 = jax.block_until_ready(
        focal_loss(logits2, targets2, alpha=alpha2, gamma=2.0,
                   size_average=False, tile_n=128))
    ref2 = jax.block_until_ready(
        _reference_focal_loss(logits2, targets2, alpha=alpha2, gamma=2.0,
                              size_average=False))
    assert np.allclose(np.asarray(loss2), np.asarray(ref2),
                       rtol=1e-4, atol=1e-4), (loss2, ref2)

    print("KERNEL_OK")
</pallas_src>

<mosaic_0001>
module attributes {stable_mosaic.version = 11 : i64} {
  func.func @_focal_loss_kernel(%arg0: i32, %arg1: i32, %arg2: memref<7x8xf32, #tpu.memory_space<vmem>>, %arg3: memref<1x8xi32, #tpu.memory_space<vmem>>, %arg4: memref<7x1xf32, #tpu.memory_space<vmem>>, %arg5: memref<1x1x1xf32, #tpu.memory_space<vmem>>, %arg6: memref<1x8xf32, #tpu.memory_space<vmem>>) attributes {dimension_semantics = [#tpu.dimension_semantics<parallel>, #tpu.dimension_semantics<arbitrary>], iteration_bounds = array<i64: 1, 1>, scalar_prefetch = 0 : i64, scratch_operands = 1 : i64, tpu.core_type = #tpu.core_type<tc>, window_params = [{transform_indices = @transform_0, window_bounds = array<i64: 7, 8>}, {transform_indices = @transform_1, window_bounds = array<i64: 1, 8>}, {pipeline_mode = #tpu.pipeline_mode<synchronous>, transform_indices = @transform_2, window_bounds = array<i64: 7, 1>}, {transform_indices = @transform_3, window_bounds = array<i64: 1, 1, 1>}]} {
    %c0_i32 = arith.constant 0 : i32
    %0 = arith.cmpi eq, %arg1, %c0_i32 : i32
    %1 = arith.extui %0 : i1 to i32
    %c0_i32_0 = arith.constant 0 : i32
    %2 = arith.cmpi ne, %1, %c0_i32_0 : i32
    scf.if %2 {
      %cst_15 = arith.constant 0.000000e+00 : f32
      %39 = vector.broadcast %cst_15 : f32 to vector<1x8xf32>
      %c0_16 = arith.constant 0 : index
      %c0_17 = arith.constant 0 : index
      %40 = vector.load %arg6[%c0_16, %c0_17] : memref<1x8xf32, #tpu.memory_space<vmem>>, vector<1x8xf32>
      tpu.vector_store %arg6[%c0_16, %c0_17], %39 {strides = array<i32>} : memref<1x8xf32, #tpu.memory_space<vmem>>, vector<1x8xf32>,
    } else {
    }
    %c0 = arith.constant 0 : index
    %c0_1 = arith.constant 0 : index
    %3 = vector.load %arg2[%c0, %c0_1] : memref<7x8xf32, #tpu.memory_space<vmem>>, vector<7x8xf32>
    %c0_2 = arith.constant 0 : index
    %c0_3 = arith.constant 0 : index
    %4 = vector.load %arg3[%c0_2, %c0_3] : memref<1x8xi32, #tpu.memory_space<vmem>>, vector<1x8xi32>
    %5 = tpu.iota {dimensions = array<i32: 0>} : vector<7x8xi32>
    %6 = vector.broadcast %4 : vector<1x8xi32> to vector<7x8xi32>
    %7 = arith.cmpi eq, %5, %6 : vector<7x8xi32>
    %8 = arith.extui %7 : vector<7x8xi1> to vector<7x8xi32>
    %9 = arith.sitofp %8 : vector<7x8xi32> to vector<7x8xf32>
    %cst = arith.constant dense<0xFF800000> : vector<8xf32>
    %10 = vector.multi_reduction <maximumf>, %3, %cst [0] : vector<7x8xf32> to vector<8xf32>
    %11 = vector.shape_cast %10 : vector<8xf32> to vector<1x8xf32>
    %12 = vector.broadcast %11 : vector<1x8xf32> to vector<7x8xf32>
    %13 = arith.subf %3, %12 : vector<7x8xf32>
    %14 = math.exp %13 : vector<7x8xf32>
    %cst_4 = arith.constant dense<0.000000e+00> : vector<8xf32>
    %15 = vector.multi_reduction <add>, %14, %cst_4 [0] : vector<7x8xf32> to vector<8xf32>
    %16 = vector.shape_cast %15 : vector<8xf32> to vector<1x8xf32>
    %17 = arith.mulf %3, %9 : vector<7x8xf32>
    %cst_5 = arith.constant dense<0.000000e+00> : vector<8xf32>
    %18 = vector.multi_reduction <add>, %17, %cst_5 [0] : vector<7x8xf32> to vector<8xf32>
    %19 = vector.shape_cast %18 : vector<8xf32> to vector<1x8xf32>
    %20 = arith.mulf %14, %9 : vector<7x8xf32>
    %cst_6 = arith.constant dense<0.000000e+00> : vector<8xf32>
    %21 = vector.multi_reduction <add>, %20, %cst_6 [0] : vector<7x8xf32> to vector<8xf32>
    %22 = vector.shape_cast %21 : vector<8xf32> to vector<1x8xf32>
    %23 = arith.subf %19, %11 : vector<1x8xf32>
    %24 = math.log %16 : vector<1x8xf32>
    %25 = arith.subf %23, %24 : vector<1x8xf32>
    %26 = arith.divf %22, %16 : vector<1x8xf32>
    %cst_7 = arith.constant 1.000000e+00 : f32
    %27 = vector.broadcast %cst_7 : f32 to vector<1x8xf32>
    %28 = arith.subf %27, %26 : vector<1x8xf32>
    %29 = arith.mulf %28, %28 : vector<1x8xf32>
    %30 = arith.mulf %29, %25 : vector<1x8xf32>
    %cst_8 = arith.constant 0.000000e+00 : f32
    %31 = vector.broadcast %cst_8 : f32 to vector<1x8xf32>
    %32 = arith.subf %31, %30 : vector<1x8xf32>
    %c0_9 = arith.constant 0 : index
    %c0_10 = arith.constant 0 : index
    %33 = vector.load %arg6[%c0_9, %c0_10] : memref<1x8xf32, #tpu.memory_space<vmem>>, vector<1x8xf32>
    %34 = arith.addf %33, %32 : vector<1x8xf32>
    %c0_11 = arith.constant 0 : index
    %c0_12 = arith.constant 0 : index
    %35 = vector.load %arg6[%c0_11, %c0_12] : memref<1x8xf32, #tpu.memory_space<vmem>>, vector<1x8xf32>
    tpu.vector_store %arg6[%c0_11, %c0_12], %34 {strides = array<i32>} : memref<1x8xf32, #tpu.memory_space<vmem>>, vector<1x8xf32>,
    %c0_i32_13 = arith.constant 0 : i32
    %36 = arith.cmpi eq, %arg1, %c0_i32_13 : i32
    %37 = arith.extui %36 : i1 to i32
    %c0_i32_14 = arith.constant 0 : i32
    %38 = arith.cmpi ne, %37, %c0_i32_14 : i32
    scf.if %38 {
      %c0_15 = arith.constant 0 : index
      %c0_16 = arith.constant 0 : index
      %39 = vector.load %arg6[%c0_15, %c0_16] : memref<1x8xf32, #tpu.memory_space<vmem>>, vector<1x8xf32>
      %cst_17 = arith.constant dense<0.000000e+00> : vector<1xf32>
      %40 = vector.multi_reduction <add>, %39, %cst_17 [1] : vector<1x8xf32> to vector<1xf32>
      %41 = vector.shape_cast %40 : vector<1xf32> to vector<1x1xf32>
      %42 = vector.shape_cast %41 : vector<1x1xf32> to vector<1x1x1xf32>
      %c0_18 = arith.constant 0 : index
      %c0_19 = arith.constant 0 : index
      %c0_20 = arith.constant 0 : index
      %43 = vector.load %arg5[%c0_18, %c0_19, %c0_20] : memref<1x1x1xf32, #tpu.memory_space<vmem>>, vector<1x1x1xf32>
      tpu.vector_store %arg5[%c0_18, %c0_19, %c0_20], %42 {strides = array<i32>} : memref<1x1x1xf32, #tpu.memory_space<vmem>>, vector<1x1x1xf32>,
    } else {
    }
    return
  }
  func.func @transform_0(%arg0: i32, %arg1: i32) -> (i32, i32) {
    %c1_i32 = arith.constant 1 : i32
    %0 = arith.muli %arg0, %c1_i32 : i32
    %1 = arith.addi %0, %arg1 : i32
    %c0_i32 = arith.constant 0 : i32
    %2 = arith.minsi %1, %c0_i32 : i32
    %c0_i32_0 = arith.constant 0 : i32
    %c0_i32_1 = arith.constant 0 : i32
    return %c0_i32_0, %2 : i32, i32
  }
  func.func @transform_1(%arg0: i32, %arg1: i32) -> (i32, i32) {
    %c1_i32 = arith.constant 1 : i32
    %0 = arith.muli %arg0, %c1_i32 : i32
    %1 = arith.addi %0, %arg1 : i32
    %c0_i32 = arith.constant 0 : i32
    %2 = arith.minsi %1, %c0_i32 : i32
    %c0_i32_0 = arith.constant 0 : i32
    %c0_i32_1 = arith.constant 0 : i32
    return %c0_i32_0, %2 : i32, i32
  }
  func.func @transform_2(%arg0: i32, %arg1: i32) -> (i32, i32) {
    %c0_i32 = arith.constant 0 : i32
    %c0_i32_0 = arith.constant 0 : i32
    %c0_i32_1 = arith.constant 0 : i32
    return %c0_i32, %c0_i32_0 : i32, i32
  }
  func.func @transform_3(%arg0: i32, %arg1: i32) -> (i32, i32, i32) {
    %c0_i32 = arith.constant 0 : i32
    %c0_i32_0 = arith.constant 0 : i32
    %c0_i32_1 = arith.constant 0 : i32
    return %arg0, %c0_i32, %c0_i32_0 : i32, i32, i32
  }
}

</mosaic_0001>

<llo_original>
// kernel: tpu_custom_call.1
$region0: #{tpu_custom_call.1}
  #allocation0 [shape = 'u32[]', space=smem, size = 0x4, offset = 0x4, fixed_abs, tag = 'smem constant byte address 0x4 - core index']
  #allocation1 [shape = 'u32[72,128]{1,0:T(1,128)}', space=vmem, size = 0x9000, scoped, tag = 'internal scratch']
  #allocation2 [shape = 'f32[1,8]{1,0:T(1,128)}', space=vmem, size = 0x200, scoped, tag = 'scratch operand']
  %s0 = inlined_call_operand.vmem [shape: f32[7,8], index: 0, kind: input, shape index: {}]
  %s1 = inlined_call_operand.vmem [shape: s32[1,8], index: 1, kind: input, shape index: {}]
  %s2 = inlined_call_operand.vmem [shape: f32[7,1], index: 2, kind: input, shape index: {}]
  %s3 = inlined_call_operand.hbm [shape: f32[1,1,1], index: 3, kind: output, shape index: {}]
  %s4 = sld [smem:[#allocation0]]
  $region30: #{tpu_custom_call.1} parent=0
    _
  %s6 = ssub.s32 1, %s4
  %s7 = scalar_select 0, %s6, %s4
  $region1: #{tpu_custom_call.1} parent=0
    #allocation3 [shape = 'u8[512]{0}', space=vmem, size = 0x400, scoped, tag = 'output window, operand 0, single buffered']
    #allocation4 [shape = 's32[1]{0}', space=sflag, size = 0x4, scoped, tag = 'scoped memory for tpu_custom_call.1']
    %8 = vsyncpa [#allocation4], 0
    // Predicated region
    $region2: #{tpu_custom_call.1} parent=1 // pred_check
      _
    $region3: #{tpu_custom_call.1} parent=1 // pred_check_branch
      %10 = sbr.rel (0) target = $region5
    $region4: #{tpu_custom_call.1} parent=1 // pred_region
      %s11 = sadd.s32 0, 0
      %p12 = scmp.lt.s32.totalorder %s11, 0
      %s13 = scalar_select %p12, %s11, 0
      %p14 = scmp.lt.s32.totalorder %s13, 0
      %s15 = scalar_select %p14, %s13, 0
      %s16 = smul.addr %s15, 8
      %s17 = scalar_lea.vmem %s0, %s16
      %s18 = sadd.s32 0, 0
      %p19 = scmp.lt.s32.totalorder %s18, 0
      %s20 = scalar_select %p19, %s18, 0
    $region5: #{tpu_custom_call.1} parent=1 // pred_fallthru
      _
    // Predicated region
    $region6: #{tpu_custom_call.1} parent=1 // pred_check
      _
    $region7: #{tpu_custom_call.1} parent=1 // pred_check_branch
      %22 = sbr.rel (0) target = $region9
    $region8: #{tpu_custom_call.1} parent=1 // pred_region
      %s23 = sadd.s32 0, 0
      %p24 = scmp.lt.s32.totalorder %s23, 0
      %s25 = scalar_select %p24, %s23, 0
      %p26 = scmp.lt.s32.totalorder %s25, 0
      %s27 = scalar_select %p26, %s25, 0
      %s28 = scalar_lea.vmem %s1, %s27
      %s29 = sadd.s32 0, 0
      %p30 = scmp.lt.s32.totalorder %s29, 0
      %s31 = scalar_select %p30, %s29, 0
    $region9: #{tpu_custom_call.1} parent=1 // pred_fallthru
      _
    // Predicated region
    $region10: #{tpu_custom_call.1} parent=1 // pred_check
      _
    $region11: #{tpu_custom_call.1} parent=1 // pred_check_branch
      %33 = sbr.rel (0) target = $region13
    $region12: #{tpu_custom_call.1} parent=1 // pred_region
      _
    $region13: #{tpu_custom_call.1} parent=1 // pred_fallthru
      _
    %s34 = sadd.s32 0, 0
    %p35 = scmp.lt.s32.totalorder %s34, 0
    %s36 = scalar_select %p35, %s34, 0
    %p37 = scmp.lt.s32.totalorder %s36, 0
    %s38 = scalar_select %p37, %s36, 0
    %s39 = smul.addr %s38, 8
    %s40 = scalar_lea.vmem %s0, %s39
    %s41 = sadd.s32 0, 0
    %p42 = scmp.lt.s32.totalorder %s41, 0
    %s43 = scalar_select %p42, %s41, 0
    %p44 = scmp.lt.s32.totalorder %s43, 0
    %s45 = scalar_select %p44, %s43, 0
    %s46 = scalar_lea.vmem %s1, %s45
    %s47 = sadd.s32 0, 0
    %p48 = scmp.lt.s32.totalorder %s47, 0
    %s49 = scalar_select %p48, %s47, 0
    %p50 = scmp.lt.s32.totalorder %s49, 0
    %s51 = scalar_select %p50, %s49, 0
    %s52 = smul.addr %s51, 8
    %s53 = scalar_lea.vmem %s0, %s52
    %s54 = sadd.s32 0, 0
    %p55 = scmp.lt.s32.totalorder %s54, 0
    %s56 = scalar_select %p55, %s54, 0
    %s57 = sadd.s32 0, 0
    %p58 = scmp.lt.s32.totalorder %s57, 0
    %s59 = scalar_select %p58, %s57, 0
    %p60 = scmp.lt.s32.totalorder %s59, 0
    %s61 = scalar_select %p60, %s59, 0
    %s62 = scalar_lea.vmem %s1, %s61
    %s63 = sadd.s32 0, 0
    %p64 = scmp.lt.s32.totalorder %s63, 0
    %s65 = scalar_select %p64, %s63, 0
    %p66 = scmp.eq.s32.totalorder 0, 0
    // Predicated region
    $region14: #{tpu_custom_call.1} parent=1 // pred_check
      %p67 = pneg %p66
    $region15: #{tpu_custom_call.1} parent=1 // pred_check_branch
      %69 = sbr.rel (%p67) target = $region17
    $region16: #{tpu_custom_call.1} parent=1 // pred_region
      %vm70 = vcmask 57344
      %71 = vst.msk [vmem:[#allocation2] sm:$0x1] %vm70, 0.0
    $region17: #{tpu_custom_call.1} parent=1 // pred_fallthru
      _
    %v72 = vld [vmem:[%s53] sm:$0x7f]
    %v73 = vld [vmem:[%s62] sm:$0x1]
    %v74 = vlaneseq
    %v75 = vshrl.u32 %v74, 7
    %v76 = vperm.slane %v73, 0
    %vm77 = vcmp.eq.s32.totalorder %v75, %v76
    %v78 = vsel %vm77, 1, 0
    %v79 = vcvt.s32.f32 %v78
    %vm80 = vcmask 63488
    %v81 = vsel %vm80, %v72, -inf
    %v82 = vrot.slane %v81, 4
    %v83 = vmax.f32 %v81, %v82
    %v84 = vrot.slane %v83, 2
    %v85 = vmax.f32 %v83, %v84
    %v86 = vrot.slane %v85, 1
    %v87 = vmax.f32 %v85, %v86
    %v88 = vsub.f32 %v72, %v87
    %v89 = vmul.f32 %v88, 1.442695
    %v90 = vpow.pop %v89
    %v91 = vsel %vm80, %v90, 0.0
    %v92 = vrot.slane %v91, 4
    %v93 = vadd.f32 %v91, %v92
    %v94 = vrot.slane %v93, 2
    %v95 = vadd.f32 %v93, %v94
    %v96 = vrot.slane %v95, 1
    %v97 = vadd.f32 %v95, %v96
    %v98 = vmul.f32 %v72, %v79
    %v99 = vsel %vm80, %v98, 0.0
    %v100 = vrot.slane %v99, 4
    %v101 = vadd.f32 %v99, %v100
    %v102 = vrot.slane %v101, 2
    %v103 = vadd.f32 %v101, %v102
    %v104 = vrot.slane %v103, 1
    %v105 = vadd.f32 %v103, %v104
    %v106 = vmul.f32 %v90, %v79
    %v107 = vsel %vm80, %v106, 0.0
    %v108 = vrot.slane %v107, 4
    %v109 = vadd.f32 %v107, %v108
    %v110 = vrot.slane %v109, 2
    %v111 = vadd.f32 %v109, %v110
    %v112 = vrot.slane %v111, 1
    %v113 = vadd.f32 %v111, %v112
    %v114 = vsub.f32 %v105, %v87
    %v115 = vlog2.pop %v97
    %v116 = vmul.f32 %v115, 0.6931472
    %v117 = vsub.f32 %v114, %v116
    %v118 = vrcp.pop %v97
    %v119 = vmul.f32 %v97, %v118
    %v120 = vsub.f32 1.0, %v119
    %v121 = vmul.f32 %v118, %v120
    %v122 = vadd.f32 %v118, %v121
    %vm123 = vweird.f32 %v97
    %vm124 = vweird.f32 %v118
    %vm125 = vmor %vm123, %vm124
    %v126 = vsel %vm125, %v118, %v122
    %v127 = vand.u32 2147483647, %v97
    %vm128 = vcmp.eq.f32.partialorder %v127, 8.507059e+37
    %v129 = vand.u32 %v97, 2147483648
    %v130 = vor.u32 1.1754944e-38, %v129
    %v131 = vsel %vm128, %v130, %v126
    %v132 = vmul.f32 %v113, %v131
    %v133 = vsub.f32 1.0, %v132
    %v134 = vmul.f32 %v133, %v133
    %v135 = vmul.f32 %v134, %v117
    %v136 = vsub.f32 0.0, %v135
    %v137 = vld [vmem:[#allocation2] sm:$0x1]
    %v138 = vadd.f32 %v137, %v136
    %vm139 = vcmask 57344
    %140 = vst.msk [vmem:[#allocation2] sm:$0x1] %vm139, %v138
    // Predicated region
    $region18: #{tpu_custom_call.1} parent=1 // pred_check
      %p141 = pneg %p66
    $region19: #{tpu_custom_call.1} parent=1 // pred_check_branch
      %143 = sbr.rel (%p141) target = $region21
    $region20: #{tpu_custom_call.1} parent=1 // pred_region
      %v144 = vld [vmem:[#allocation2] sm:$0x1]
      %v145 = vsel %vm139, %v144, 0.0
      %146 = vadd.xlane.f32.xlu0 %v145
      %v147 = vpop.xlane.xlu0 %146
      %vm148 = vcmask 0
      %149 = vst.msk [vmem:[#allocation3] sm:$0x1] %vm148, %v147
    $region21: #{tpu_custom_call.1} parent=1 // pred_fallthru
      _
    // Predicated region
    $region22: #{tpu_custom_call.1} parent=1 // pred_check
      _
    $region23: #{tpu_custom_call.1} parent=1 // pred_check_branch
      %151 = sbr.rel (0) target = $region25
    $region24: #{tpu_custom_call.1} parent=1 // pred_region
      %153 = vsyncadd [#allocation4], 0
      %s155 = sshll.u32 [#allocation3], 4
      %s156 = int_to_ptr.vmem [resolvable:$true] %s155
      %s157 = sshll.u32 %s3, 4
      %s158 = int_to_ptr.hbm [resolvable:$true] %s157
      %160 = dma.vmem_to_hbm [thread:$0]  %s156, 16, %s158, [#allocation4]
    $region25: #{tpu_custom_call.1} parent=1 // pred_fallthru
      _
    // Predicated region
    $region26: #{tpu_custom_call.1} parent=1 // pred_check
      _
    $region27: #{tpu_custom_call.1} parent=1 // pred_check_branch
      %162 = sbr.rel (0) target = $region29
    $region28: #{tpu_custom_call.1} parent=1 // pred_region
      %164 = dma.done [#allocation4], 16
    $region29: #{tpu_custom_call.1} parent=1 // pred_fallthru
      _
    %165 = vsyncpa [#allocation4], 1

</llo_original>
